<compile_context>
chip_gen: v7x
topology: tpu7x:2x2x1
jax: 0.10.0
libtpu: 0.0.40
codegen_flags: <defaults>
</compile_context>

<pallas_src>
import math
import numpy as np
import jax
import jax.numpy as jnp
from jax.experimental import pallas as pl
from jax.experimental.pallas import tpu as pltpu


# ----------------------------------------------------------------------------
# Gaussian window / band-matrix constants (host-side, numpy, float32)
# ----------------------------------------------------------------------------
def _gaussian_1d(window_size: int, sigma: float = 1.5) -> np.ndarray:
    g = np.array(
        [math.exp(-((x - window_size // 2) ** 2) / float(2 * sigma ** 2))
         for x in range(window_size)],
        dtype=np.float32,
    )
    return (g / g.sum(dtype=np.float32)).astype(np.float32)


def _band_matrix(n: int, w1d: np.ndarray) -> np.ndarray:
    """M[i, j] = w1d[j - i + pad] (zero outside the band).

    (M @ x)[i] = sum_k w1d[k] * x[i + k - pad] with zero "same" padding, i.e.
    the 1-D cross-correlation F.conv2d performs along one spatial axis.
    """
    ws = w1d.shape[0]
    pad = ws // 2
    m = np.zeros((n, n), dtype=np.float32)
    for i in range(n):
        for k in range(ws):
            j = i + k - pad
            if 0 <= j < n:
                m[i, j] = w1d[k]
    return m


# ----------------------------------------------------------------------------
# Kernel
# ----------------------------------------------------------------------------
def _make_ssim_kernel():
    C1 = np.float32(0.01 ** 2)
    C2 = np.float32(0.03 ** 2)

    def kernel(r_ref, c_ref, x_ref, y_ref, out_ref):
        # r_ref: (H, H)  Gaussian row-conv band matrix (left multiply)
        # c_ref: (L, L)  block-diag Gaussian col-conv band matrix (right mult.)
        # x_ref / y_ref: (H, L) lane-packed image slabs (B planes side by side)
        # out_ref: (1, L) per-lane (== per-plane-column) partial sums
        a = x_ref[...]
        b = y_ref[...]
        r = r_ref[...]
        c = c_ref[...]

        def conv2(v):
            # Separable Gaussian "same" conv == two MXU matmuls.
            t = jnp.dot(r, v, preferred_element_type=jnp.float32)   # row pass
            return jnp.dot(t, c, preferred_element_type=jnp.float32)  # col pass

        mu1 = conv2(a)
        mu2 = conv2(b)
        s11 = conv2(a * a)
        s22 = conv2(b * b)
        s12 = conv2(a * b)

        mu1_sq = mu1 * mu1
        mu2_sq = mu2 * mu2
        mu1_mu2 = mu1 * mu2
        sigma1_sq = s11 - mu1_sq
        sigma2_sq = s22 - mu2_sq
        sigma12 = s12 - mu1_mu2

        num = (2.0 * mu1_mu2 + C1) * (2.0 * sigma12 + C2)
        den = (mu1_sq + mu2_sq + C1) * (sigma1_sq + sigma2_sq + C2)
        # den >= C1*C2 > 0, so the EUP approximate reciprocal is safe.
        ssim_map = num * pl.reciprocal(den, approx=True)          # (H, L)

        # Lane-dense partial sums; final reduction happens in plain JAX.
        out_ref[...] = jnp.sum(ssim_map, axis=0, keepdims=True)

    return kernel


# ----------------------------------------------------------------------------
# Wrapper
# ----------------------------------------------------------------------------
def _vmem_limit_bytes(default: int = 48 * 1024 * 1024) -> int:
    try:
        info = pltpu.get_tpu_info()
        cap = getattr(info, "vmem_capacity_bytes", None)
        if cap:
            return int(cap * 0.75)
    except Exception:
        pass
    return default


def ssim_pallas(img1: jax.Array, img2: jax.Array, window_size: int = 11) -> jax.Array:
    """SSIM.forward with size_average=False: returns ssim_map.mean() (f32 scalar)."""
    assert img1.shape == img2.shape and img1.ndim == 4
    N, C, H, W = img1.shape
    P = N * C

    LANE = 128
    B = max(1, LANE // W)          # planes packed along the lane axis per step
    if P >= 2:
        # Keep at least 2 grid steps so both v7x TensorCores get work.
        B = max(1, min(B, (P + 1) // 2))
    G = (P + B - 1) // B           # grid size (independent, "parallel" steps)
    Ppad = G * B
    L = B * W

    w1d = _gaussian_1d(window_size)
    Rrow = _band_matrix(H, w1d)                            # (H, H), left mult.
    Ccol = _band_matrix(W, w1d).T                          # (W, W), right mult.
    Cblk = np.kron(np.eye(B, dtype=np.float32), Ccol)      # (L, L) block diag

    def pack(x):
        x = x.astype(jnp.float32).reshape(P, H, W)
        if Ppad != P:
            # Zero planes are sliced back out before the final sum.
            x = jnp.concatenate([x, jnp.zeros((Ppad - P, H, W), jnp.float32)], axis=0)
        # (G, B, H, W) -> (G, H, B, W) -> (G, H, B*W): lane-dense plane packing.
        # TODO(synk): for very large P*H*W this host transpose could move
        # on-chip (BlockSpec over (P,H,W) + pltpu.einshape) to save an HBM pass.
        return x.reshape(G, B, H, W).transpose(0, 2, 1, 3).reshape(G, H, L)

    x1 = pack(img1)
    x2 = pack(img2)

    # Advisory cost hint: 5 row matmuls + 5 col matmuls + ~15-op elementwise tail.
    flops_per_step = 2 * 5 * (H * H * L + H * L * L) + 15 * H * L
    cost = pl.CostEstimate(
        flops=G * flops_per_step,
        transcendentals=G * H * L,                                  # reciprocal
        bytes_accessed=4 * (2 * G * H * L + G * L + H * H + L * L),
    )

    colsums = pl.pallas_call(
        _make_ssim_kernel(),
        out_shape=jax.ShapeDtypeStruct((G, 1, L), jnp.float32),
        grid=(G,),
        in_specs=[
            pl.BlockSpec((H, H), lambda i: (0, 0)),           # Rrow (resident)
            pl.BlockSpec((L, L), lambda i: (0, 0)),           # Cblk (resident)
            pl.BlockSpec((None, H, L), lambda i: (i, 0, 0)),  # img1 slab
            pl.BlockSpec((None, H, L), lambda i: (i, 0, 0)),  # img2 slab
        ],
        out_specs=pl.BlockSpec((None, 1, L), lambda i: (i, 0, 0)),
        compiler_params=pltpu.CompilerParams(
            dimension_semantics=("parallel",),
            vmem_limit_bytes=_vmem_limit_bytes(),
        ),
        cost_estimate=cost,
    )(jnp.asarray(Rrow), jnp.asarray(Cblk), x1, x2)

    # (G, 1, B*W) -> (Ppad, W): per-plane column sums; drop zero-padded planes.
    per_plane_cols = colsums.reshape(Ppad, W)[:P]
    total = jnp.sum(per_plane_cols, dtype=jnp.float32)
    return (total / jnp.float32(P * H * W)).astype(jnp.float32)


if __name__ == "__main__":
    key = jax.random.PRNGKey(0)
    k1, k2 = jax.random.split(key)
    # Small shapes consistent with the module (NCHW images in [0, 1]).
    img1 = jax.random.uniform(k1, (2, 4, 16, 16), dtype=jnp.float32)
    img2 = jax.random.uniform(k2, (2, 4, 16, 16), dtype=jnp.float32)

    out = ssim_pallas(img1, img2, window_size=11)
    jax.block_until_ready(out)
    print("KERNEL_OK")
</pallas_src>

<mosaic_0001>
module attributes {stable_mosaic.version = 11 : i64} {
  func.func @kernel(%arg0: i32, %arg1: memref<16x16xf32, #tpu.memory_space<vmem>>, %arg2: memref<64x64xf32, #tpu.memory_space<vmem>>, %arg3: memref<1x16x64xf32, #tpu.memory_space<vmem>>, %arg4: memref<1x16x64xf32, #tpu.memory_space<vmem>>, %arg5: memref<1x1x64xf32, #tpu.memory_space<vmem>>) attributes {dimension_semantics = [#tpu.dimension_semantics<parallel>], iteration_bounds = array<i64: 2>, scalar_prefetch = 0 : i64, scratch_operands = 0 : i64, tpu.core_type = #tpu.core_type<tc>, window_params = [{pipeline_mode = #tpu.pipeline_mode<synchronous>, transform_indices = @transform_0, window_bounds = array<i64: 16, 16>}, {pipeline_mode = #tpu.pipeline_mode<synchronous>, transform_indices = @transform_1, window_bounds = array<i64: 64, 64>}, {transform_indices = @transform_2, window_bounds = array<i64: 1, 16, 64>}, {transform_indices = @transform_3, window_bounds = array<i64: 1, 16, 64>}, {transform_indices = @transform_4, window_bounds = array<i64: 1, 1, 64>}]} {
    %c0 = arith.constant 0 : index
    %c0_0 = arith.constant 0 : index
    %c0_1 = arith.constant 0 : index
    %0 = vector.load %arg3[%c0, %c0_0, %c0_1] : memref<1x16x64xf32, #tpu.memory_space<vmem>>, vector<1x16x64xf32>
    %1 = vector.shape_cast %0 : vector<1x16x64xf32> to vector<16x64xf32>
    %c0_2 = arith.constant 0 : index
    %c0_3 = arith.constant 0 : index
    %c0_4 = arith.constant 0 : index
    %2 = vector.load %arg4[%c0_2, %c0_3, %c0_4] : memref<1x16x64xf32, #tpu.memory_space<vmem>>, vector<1x16x64xf32>
    %3 = vector.shape_cast %2 : vector<1x16x64xf32> to vector<16x64xf32>
    %c0_5 = arith.constant 0 : index
    %c0_6 = arith.constant 0 : index
    %4 = vector.load %arg1[%c0_5, %c0_6] : memref<16x16xf32, #tpu.memory_space<vmem>>, vector<16x16xf32>
    %c0_7 = arith.constant 0 : index
    %c0_8 = arith.constant 0 : index
    %5 = vector.load %arg2[%c0_7, %c0_8] : memref<64x64xf32, #tpu.memory_space<vmem>>, vector<64x64xf32>
    %cst = arith.constant dense<0.000000e+00> : vector<16x64xf32>
    %6 = tpu.matmul %4, %1, %cst {dimension_numbers = #tpu.dot_dimension_numbers<[1], [0], [0], [1], [0, 0, 1, 1], [], []>} : vector<16x16xf32>, vector<16x64xf32>, vector<16x64xf32> -> vector<16x64xf32>
    %cst_9 = arith.constant dense<0.000000e+00> : vector<16x64xf32>
    %7 = tpu.matmul %6, %5, %cst_9 {dimension_numbers = #tpu.dot_dimension_numbers<[1], [0], [0], [1], [0, 0, 1, 1], [], []>} : vector<16x64xf32>, vector<64x64xf32>, vector<16x64xf32> -> vector<16x64xf32>
    %cst_10 = arith.constant dense<0.000000e+00> : vector<16x64xf32>
    %8 = tpu.matmul %4, %3, %cst_10 {dimension_numbers = #tpu.dot_dimension_numbers<[1], [0], [0], [1], [0, 0, 1, 1], [], []>} : vector<16x16xf32>, vector<16x64xf32>, vector<16x64xf32> -> vector<16x64xf32>
    %cst_11 = arith.constant dense<0.000000e+00> : vector<16x64xf32>
    %9 = tpu.matmul %8, %5, %cst_11 {dimension_numbers = #tpu.dot_dimension_numbers<[1], [0], [0], [1], [0, 0, 1, 1], [], []>} : vector<16x64xf32>, vector<64x64xf32>, vector<16x64xf32> -> vector<16x64xf32>
    %10 = arith.mulf %1, %1 : vector<16x64xf32>
    %cst_12 = arith.constant dense<0.000000e+00> : vector<16x64xf32>
    %11 = tpu.matmul %4, %10, %cst_12 {dimension_numbers = #tpu.dot_dimension_numbers<[1], [0], [0], [1], [0, 0, 1, 1], [], []>} : vector<16x16xf32>, vector<16x64xf32>, vector<16x64xf32> -> vector<16x64xf32>
    %cst_13 = arith.constant dense<0.000000e+00> : vector<16x64xf32>
    %12 = tpu.matmul %11, %5, %cst_13 {dimension_numbers = #tpu.dot_dimension_numbers<[1], [0], [0], [1], [0, 0, 1, 1], [], []>} : vector<16x64xf32>, vector<64x64xf32>, vector<16x64xf32> -> vector<16x64xf32>
    %13 = arith.mulf %3, %3 : vector<16x64xf32>
    %cst_14 = arith.constant dense<0.000000e+00> : vector<16x64xf32>
    %14 = tpu.matmul %4, %13, %cst_14 {dimension_numbers = #tpu.dot_dimension_numbers<[1], [0], [0], [1], [0, 0, 1, 1], [], []>} : vector<16x16xf32>, vector<16x64xf32>, vector<16x64xf32> -> vector<16x64xf32>
    %cst_15 = arith.constant dense<0.000000e+00> : vector<16x64xf32>
    %15 = tpu.matmul %14, %5, %cst_15 {dimension_numbers = #tpu.dot_dimension_numbers<[1], [0], [0], [1], [0, 0, 1, 1], [], []>} : vector<16x64xf32>, vector<64x64xf32>, vector<16x64xf32> -> vector<16x64xf32>
    %16 = arith.mulf %1, %3 : vector<16x64xf32>
    %cst_16 = arith.constant dense<0.000000e+00> : vector<16x64xf32>
    %17 = tpu.matmul %4, %16, %cst_16 {dimension_numbers = #tpu.dot_dimension_numbers<[1], [0], [0], [1], [0, 0, 1, 1], [], []>} : vector<16x16xf32>, vector<16x64xf32>, vector<16x64xf32> -> vector<16x64xf32>
    %cst_17 = arith.constant dense<0.000000e+00> : vector<16x64xf32>
    %18 = tpu.matmul %17, %5, %cst_17 {dimension_numbers = #tpu.dot_dimension_numbers<[1], [0], [0], [1], [0, 0, 1, 1], [], []>} : vector<16x64xf32>, vector<64x64xf32>, vector<16x64xf32> -> vector<16x64xf32>
    %19 = arith.mulf %7, %7 : vector<16x64xf32>
    %20 = arith.mulf %9, %9 : vector<16x64xf32>
    %21 = arith.mulf %7, %9 : vector<16x64xf32>
    %22 = arith.subf %12, %19 : vector<16x64xf32>
    %23 = arith.subf %15, %20 : vector<16x64xf32>
    %24 = arith.subf %18, %21 : vector<16x64xf32>
    %cst_18 = arith.constant 2.000000e+00 : f32
    %25 = vector.broadcast %cst_18 : f32 to vector<16x64xf32>
    %26 = arith.mulf %25, %21 : vector<16x64xf32>
    %cst_19 = arith.constant 9.99999974E-5 : f32
    %27 = vector.broadcast %cst_19 : f32 to vector<16x64xf32>
    %28 = arith.addf %26, %27 : vector<16x64xf32>
    %cst_20 = arith.constant 2.000000e+00 : f32
    %29 = vector.broadcast %cst_20 : f32 to vector<16x64xf32>
    %30 = arith.mulf %29, %24 : vector<16x64xf32>
    %cst_21 = arith.constant 8.99999984E-4 : f32
    %31 = vector.broadcast %cst_21 : f32 to vector<16x64xf32>
    %32 = arith.addf %30, %31 : vector<16x64xf32>
    %33 = arith.mulf %28, %32 : vector<16x64xf32>
    %34 = arith.addf %19, %20 : vector<16x64xf32>
    %cst_22 = arith.constant 9.99999974E-5 : f32
    %35 = vector.broadcast %cst_22 : f32 to vector<16x64xf32>
    %36 = arith.addf %34, %35 : vector<16x64xf32>
    %37 = arith.addf %22, %23 : vector<16x64xf32>
    %cst_23 = arith.constant 8.99999984E-4 : f32
    %38 = vector.broadcast %cst_23 : f32 to vector<16x64xf32>
    %39 = arith.addf %37, %38 : vector<16x64xf32>
    %40 = arith.mulf %36, %39 : vector<16x64xf32>
    %41 = tpu.reciprocal %40 {approx = true} : vector<16x64xf32> -> vector<16x64xf32>
    %42 = arith.mulf %33, %41 : vector<16x64xf32>
    %cst_24 = arith.constant dense<0.000000e+00> : vector<64xf32>
    %43 = vector.multi_reduction <add>, %42, %cst_24 [0] : vector<16x64xf32> to vector<64xf32>
    %44 = vector.shape_cast %43 : vector<64xf32> to vector<1x64xf32>
    %c0_25 = arith.constant 0 : index
    %c0_26 = arith.constant 0 : index
    %c0_27 = arith.constant 0 : index
    %45 = vector.load %arg5[%c0_25, %c0_26, %c0_27] : memref<1x1x64xf32, #tpu.memory_space<vmem>>, vector<1x1x64xf32>
    %46 = vector.shape_cast %45 : vector<1x1x64xf32> to vector<1x64xf32>
    %47 = vector.shape_cast %44 : vector<1x64xf32> to vector<1x1x64xf32>
    tpu.vector_store %arg5[%c0_25, %c0_26, %c0_27], %47 {strides = array<i32>} : memref<1x1x64xf32, #tpu.memory_space<vmem>>, vector<1x1x64xf32>,
    return
  }
  func.func @transform_0(%arg0: i32) -> (i32, i32) {
    %c0_i32 = arith.constant 0 : i32
    %c0_i32_0 = arith.constant 0 : i32
    %c0_i32_1 = arith.constant 0 : i32
    return %c0_i32, %c0_i32_0 : i32, i32
  }
  func.func @transform_1(%arg0: i32) -> (i32, i32) {
    %c0_i32 = arith.constant 0 : i32
    %c0_i32_0 = arith.constant 0 : i32
    %c0_i32_1 = arith.constant 0 : i32
    return %c0_i32, %c0_i32_0 : i32, i32
  }
  func.func @transform_2(%arg0: i32) -> (i32, i32, i32) {
    %c0_i32 = arith.constant 0 : i32
    %c0_i32_0 = arith.constant 0 : i32
    %c0_i32_1 = arith.constant 0 : i32
    return %arg0, %c0_i32, %c0_i32_0 : i32, i32, i32
  }
  func.func @transform_3(%arg0: i32) -> (i32, i32, i32) {
    %c0_i32 = arith.constant 0 : i32
    %c0_i32_0 = arith.constant 0 : i32
    %c0_i32_1 = arith.constant 0 : i32
    return %arg0, %c0_i32, %c0_i32_0 : i32, i32, i32
  }
  func.func @transform_4(%arg0: i32) -> (i32, i32, i32) {
    %c0_i32 = arith.constant 0 : i32
    %c0_i32_0 = arith.constant 0 : i32
    %c0_i32_1 = arith.constant 0 : i32
    return %arg0, %c0_i32, %c0_i32_0 : i32, i32, i32
  }
}

</mosaic_0001>

<llo_original>
// kernel: tpu_custom_call.1
$region0: #{tpu_custom_call.1}
  #allocation0 [shape = 'u32[]', space=smem, size = 0x4, offset = 0x4, fixed_abs, tag = 'smem constant byte address 0x4 - core index']
  #allocation1 [shape = 'u32[144,128]{1,0:T(1,128)}', space=vmem, size = 0x12000, scoped, tag = 'internal scratch']
  %s0 = inlined_call_operand.hbm [shape: f32[16,16], index: 0, kind: input, shape index: {}]
  %s1 = inlined_call_operand.hbm [shape: f32[64,64], index: 1, kind: input, shape index: {}]
  %s2 = inlined_call_operand.hbm [shape: f32[2,16,64], index: 2, kind: input, shape index: {}]
  %s3 = inlined_call_operand.hbm [shape: f32[2,16,64], index: 3, kind: input, shape index: {}]
  %s4 = inlined_call_operand.hbm [shape: f32[2,1,64], index: 4, kind: output, shape index: {}]
  %s5 = sld [smem:[#allocation0]]
  $region65: #{tpu_custom_call.1} parent=0
    _
  %s7 = ssub.s32 1, %s5
  %s8 = scalar_select 0, %s7, %s5
  $region1: #{tpu_custom_call.1} parent=0
    #allocation2 [shape = 'u8[8192]{0}', space=vmem, size = 0x2000, scoped, tag = 'input window, operand 0, single buffered']
    #allocation3 [shape = 's32[2]{0}', space=sflag, size = 0x8, scoped, tag = 'scoped memory for tpu_custom_call.1']
    #allocation4 [shape = 's32[2]{0}', space=sflag, size = 0x8, scoped, tag = 'scoped memory for tpu_custom_call.1']
    #allocation5 [shape = 'u8[32768]{0}', space=vmem, size = 0x8000, scoped, tag = 'input window, operand 1, single buffered']
    #allocation6 [shape = 's32[1]{0}', space=sflag, size = 0x4, scoped, tag = 'scoped memory for tpu_custom_call.1']
    #allocation7 [shape = 'u8[16384]{0}', space=vmem, size = 0x4000, scoped, tag = 'input window, operand 2']
    #allocation8 [shape = 'u8[16384]{0}', space=vmem, size = 0x4000, scoped, tag = 'input window, operand 3']
    #allocation9 [shape = 'u8[1024]{0}', space=vmem, size = 0x400, scoped, tag = 'output window, operand 0']
    %9 = vsyncpa [#allocation3], 0
    %10 = vsyncpa [#allocation6], 0
    %11 = vsyncpa [#allocation4], 0
    %s12 = scalar_lea.sflag [#allocation4], 1
    %13 = vsyncpa %s12, 0
    loop: start=0, step=1, limit=4
    $region2: #{tpu_custom_call.1} parent=1 // loop_pre_header
      _
    $region3: #{tpu_custom_call.1} parent=1 // loop_header
      %s15 = sphi 0, %s19
      %p16 = scmp.ge.s32.totalorder %s15, 4
      %s23 = sphi 0, %s23
      %s25 = sphi 0, %s23
      %s26 = sphi 0, %s25
      %s40 = sphi 0, %s26
      %s44 = sphi 0, %s44
      %s46 = sphi 0, %s44
      %s47 = sphi 0, %s46
      %s61 = sphi 0, %s47
      %s67 = sphi 0, %s69
      %s70 = sphi 0, %s67
      %s71 = sphi 0, %s70
      %s87 = sphi 0, %s71
      %s93 = sphi 0, %s95
      %s96 = sphi 0, %s93
      %s97 = sphi 0, %s96
      %s113 = sphi 0, %s97
      %s119 = sphi 0, %s121
      %s122 = sphi 0, %s119
      %s123 = sphi 0, %s122
      %s139 = sphi 0, %s123
    $region4: #{tpu_custom_call.1} parent=1 // loop_header_branch
      %18 = sbr.rel (%p16) target = $region8
    $region5: #{tpu_custom_call.1} parent=1 // loop_body
      %s20 = ssub.s32 %s15, 1
      %s21 = ssub.s32 %s15, 2
      %s22 = sadd.s32 %s15, 1
      %s24 = sadd.s32 %s23, 1
      %p27 = scmp.eq.s32.totalorder %s15, 1
      %p28 = scmp.ne.s32.totalorder %s23, %s25
      %p29 = scmp.eq.s32.totalorder %s15, 0
      %p30 = por %p28, %p29
      %p31 = scmp.ne.s32.totalorder %s23, %s25
      %p32 = scmp.eq.s32.totalorder %s20, 1
      %p33 = por %p31, %p32
      %p34 = scmp.ne.s32.totalorder %s25, %s26
      %p35 = scmp.eq.s32.totalorder %s20, 0
      %p36 = por %p34, %p35
      %p37 = scmp.ne.s32.totalorder %s25, %s26
      %p38 = scmp.eq.s32.totalorder %s21, 1
      %p39 = por %p37, %p38
      %p41 = scmp.ne.s32.totalorder %s26, %s40
      %p42 = scmp.eq.s32.totalorder %s21, 0
      %p43 = por %p41, %p42
      %s45 = sadd.s32 %s44, 1
      %p48 = scmp.eq.s32.totalorder %s15, 1
      %p49 = scmp.ne.s32.totalorder %s44, %s46
      %p50 = scmp.eq.s32.totalorder %s15, 0
      %p51 = por %p49, %p50
      %p52 = scmp.ne.s32.totalorder %s44, %s46
      %p53 = scmp.eq.s32.totalorder %s20, 1
      %p54 = por %p52, %p53
      %p55 = scmp.ne.s32.totalorder %s46, %s47
      %p56 = scmp.eq.s32.totalorder %s20, 0
      %p57 = por %p55, %p56
      %p58 = scmp.ne.s32.totalorder %s46, %s47
      %p59 = scmp.eq.s32.totalorder %s21, 1
      %p60 = por %p58, %p59
      %p62 = scmp.ne.s32.totalorder %s47, %s61
      %p63 = scmp.eq.s32.totalorder %s21, 0
      %p64 = por %p62, %p63
      %s65 = ssub.s32 %s15, %s22
      %p66 = scmp.eq.s32.totalorder %s65, 0
      %s68 = sadd.s32 %s67, 1
      %s69 = scalar_select %p66, %s67, %s68
      %p72 = pneg %p66
      %p73 = scmp.eq.s32.totalorder %s15, 1
      %p74 = por %p72, %p73
      %p75 = scmp.ne.s32.totalorder %s67, %s70
      %p76 = scmp.eq.s32.totalorder %s15, 0
      %p77 = por %p75, %p76
      %p78 = scmp.ne.s32.totalorder %s67, %s70
      %p79 = scmp.eq.s32.totalorder %s20, 1
      %p80 = por %p78, %p79
      %p81 = scmp.ne.s32.totalorder %s70, %s71
      %p82 = scmp.eq.s32.totalorder %s20, 0
      %p83 = por %p81, %p82
      %p84 = scmp.ne.s32.totalorder %s70, %s71
      %p85 = scmp.eq.s32.totalorder %s21, 1
      %p86 = por %p84, %p85
      %p88 = scmp.ne.s32.totalorder %s71, %s87
      %p89 = scmp.eq.s32.totalorder %s21, 0
      %p90 = por %p88, %p89
      %s91 = ssub.s32 %s15, %s22
      %p92 = scmp.eq.s32.totalorder %s91, 0
      %s94 = sadd.s32 %s93, 1
      %s95 = scalar_select %p92, %s93, %s94
      %p98 = pneg %p92
      %p99 = scmp.eq.s32.totalorder %s15, 1
      %p100 = por %p98, %p99
      %p101 = scmp.ne.s32.totalorder %s93, %s96
      %p102 = scmp.eq.s32.totalorder %s15, 0
      %p103 = por %p101, %p102
      %p104 = scmp.ne.s32.totalorder %s93, %s96
      %p105 = scmp.eq.s32.totalorder %s20, 1
      %p106 = por %p104, %p105
      %p107 = scmp.ne.s32.totalorder %s96, %s97
      %p108 = scmp.eq.s32.totalorder %s20, 0
      %p109 = por %p107, %p108
      %p110 = scmp.ne.s32.totalorder %s96, %s97
      %p111 = scmp.eq.s32.totalorder %s21, 1
      %p112 = por %p110, %p111
      %p114 = scmp.ne.s32.totalorder %s97, %s113
      %p115 = scmp.eq.s32.totalorder %s21, 0
      %p116 = por %p114, %p115
      %s117 = ssub.s32 %s15, %s22
      %p118 = scmp.eq.s32.totalorder %s117, 0
      %s120 = sadd.s32 %s119, 1
      %s121 = scalar_select %p118, %s119, %s120
      %p124 = pneg %p118
      %p125 = scmp.eq.s32.totalorder %s15, 1
      %p126 = por %p124, %p125
      %p127 = scmp.ne.s32.totalorder %s119, %s122
      %p128 = scmp.eq.s32.totalorder %s15, 0
      %p129 = por %p127, %p128
      %p130 = scmp.ne.s32.totalorder %s119, %s122
      %p131 = scmp.eq.s32.totalorder %s20, 1
      %p132 = por %p130, %p131
      %p133 = scmp.ne.s32.totalorder %s122, %s123
      %p134 = scmp.eq.s32.totalorder %s20, 0
      %p135 = por %p133, %p134
      %p136 = scmp.ne.s32.totalorder %s122, %s123
      %p137 = scmp.eq.s32.totalorder %s21, 1
      %p138 = por %p136, %p137
      %p140 = scmp.ne.s32.totalorder %s123, %s139
      %p141 = scmp.eq.s32.totalorder %s21, 0
      %p142 = por %p140, %p141
      %p143 = scmp.le.s32.totalorder 1, %s15
      %p144 = scmp.lt.s32.totalorder %s15, 3
      %p145 = pnand %p143, %p144
      %p146 = pneg %p145
      // Predicated region
      $region9: #{tpu_custom_call.1} parent=5 // pred_check
        _
      $region10: #{tpu_custom_call.1} parent=5 // pred_check_branch
        %148 = sbr.rel (%p145) target = $region12
      $region11: #{tpu_custom_call.1} parent=5 // pred_region
        %s149 = ssub.s32 %s15, 1
        // Predicated region
        $region13: #{tpu_custom_call.1} parent=11 // pred_check
          %p150 = pneg %p36
        $region14: #{tpu_custom_call.1} parent=11 // pred_check_branch
          %152 = sbr.rel (%p150) target = $region16
        $region15: #{tpu_custom_call.1} parent=11 // pred_region
          %s154 = ssub.s32 256, 256
          %155 = vsyncadd [#allocation3], %s154
          %s156 = sshll.u32 [#allocation2], 4
          %s157 = int_to_ptr.vmem [resolvable:$true] %s156
          %162 = dma.hbm_to_vmem [thread:$0]  %s0, 256, %s157, [#allocation3], 128, 128, 8
        $region16: #{tpu_custom_call.1} parent=11 // pred_fallthru
          _
        // Predicated region
        $region17: #{tpu_custom_call.1} parent=11 // pred_check
          %p163 = pneg %p57
        $region18: #{tpu_custom_call.1} parent=11 // pred_check_branch
          %165 = sbr.rel (%p163) target = $region20
        $region19: #{tpu_custom_call.1} parent=11 // pred_region
          %s167 = ssub.s32 1024, 1024
          %168 = vsyncadd [#allocation6], %s167
          %s169 = sshll.u32 [#allocation5], 4
          %s170 = int_to_ptr.vmem [resolvable:$true] %s169
          %175 = dma.hbm_to_vmem [thread:$0]  %s1, 1024, %s170, [#allocation6], 128, 128, 8
        $region20: #{tpu_custom_call.1} parent=11 // pred_fallthru
          _
      $region12: #{tpu_custom_call.1} parent=5 // pred_fallthru
        _
      %p176 = scmp.lt.s32.totalorder %s15, 2
      // Predicated region
      $region21: #{tpu_custom_call.1} parent=5 // pred_check
        %p177 = pneg %p176
      $region22: #{tpu_custom_call.1} parent=5 // pred_check_branch
        %179 = sbr.rel (%p177) target = $region24
      $region23: #{tpu_custom_call.1} parent=5 // pred_region
        // Predicated region
        $region25: #{tpu_custom_call.1} parent=23 // pred_check
          %p180 = pneg %p77
        $region26: #{tpu_custom_call.1} parent=23 // pred_check_branch
          %182 = sbr.rel (%p180) target = $region28
        $region27: #{tpu_custom_call.1} parent=23 // pred_region
          %s183 = sand.u32 %s15, 1
          %s184 = scalar_lea.sflag [#allocation3], %s183
          %s185 = sand.u32 %s67, 1
          %s186 = smul.addr %s185, 16
          %s187 = scalar_lea.vmem [#allocation7], %s186
          %s189 = ssub.s32 256, 256
          %190 = vsyncadd %s184, %s189
          %s191 = smul.addr %s15, 2
          %s192 = smul.addr %s191, 128
          %s193 = scalar_lea.hbm %s2, %s192
          %s194 = sshll.u32 %s187, 4
          %s195 = int_to_ptr.vmem [resolvable:$true] %s194
          %200 = dma.hbm_to_vmem [thread:$0]  %s193, 256, %s195, %s184, 128, 128, 8
        $region28: #{tpu_custom_call.1} parent=23 // pred_fallthru
          _
        // Predicated region
        $region29: #{tpu_custom_call.1} parent=23 // pred_check
          %p201 = pneg %p103
        $region30: #{tpu_custom_call.1} parent=23 // pred_check_branch
          %203 = sbr.rel (%p201) target = $region32
        $region31: #{tpu_custom_call.1} parent=23 // pred_region
          %s204 = sand.u32 %s15, 1
          %s205 = scalar_lea.sflag [#allocation3], %s204
          %s206 = sand.u32 %s93, 1
          %s207 = smul.addr %s206, 16
          %s208 = scalar_lea.vmem [#allocation8], %s207
          %s210 = ssub.s32 256, 256
          %211 = vsyncadd %s205, %s210
          %s212 = smul.addr %s15, 2
          %s213 = smul.addr %s212, 128
          %s214 = scalar_lea.hbm %s3, %s213
          %s215 = sshll.u32 %s208, 4
          %s216 = int_to_ptr.vmem [resolvable:$true] %s215
          %221 = dma.hbm_to_vmem [thread:$0]  %s214, 256, %s216, %s205, 128, 128, 8
        $region32: #{tpu_custom_call.1} parent=23 // pred_fallthru
          _
      $region24: #{tpu_custom_call.1} parent=5 // pred_fallthru
        _
      %p222 = scmp.le.s32.totalorder 1, %s15
      %p223 = scmp.lt.s32.totalorder %s15, 3
      %p224 = pnand %p222, %p223
      %p225 = pneg %p224
      // Predicated region
      $region33: #{tpu_custom_call.1} parent=5 // pred_check
        _
      $region34: #{tpu_custom_call.1} parent=5 // pred_check_branch
        %227 = sbr.rel (%p224) target = $region36
      $region35: #{tpu_custom_call.1} parent=5 // pred_region
        %s228 = ssub.s32 %s15, 1
        // Predicated region
        $region37: #{tpu_custom_call.1} parent=35 // pred_check
          %p229 = pneg %p36
        $region38: #{tpu_custom_call.1} parent=35 // pred_check_branch
          %231 = sbr.rel (%p229) target = $region40
        $region39: #{tpu_custom_call.1} parent=35 // pred_region
          %232 = dma.done [#allocation3], 256
        $region40: #{tpu_custom_call.1} parent=35 // pred_fallthru
          _
        // Predicated region
        $region41: #{tpu_custom_call.1} parent=35 // pred_check
          %p233 = pneg %p57
        $region42: #{tpu_custom_call.1} parent=35 // pred_check_branch
          %235 = sbr.rel (%p233) target = $region44
        $region43: #{tpu_custom_call.1} parent=35 // pred_region
          %236 = dma.done [#allocation6], 1024
        $region44: #{tpu_custom_call.1} parent=35 // pred_fallthru
          _
        %s237 = sand.u32 %s20, 1
        %s238 = scalar_lea.sflag [#allocation3], %s237
        %s239 = sand.u32 %s70, 1
        %s240 = smul.addr %s239, 16
        %s241 = scalar_lea.vmem [#allocation7], %s240
        // Predicated region
        $region45: #{tpu_custom_call.1} parent=35 // pred_check
          %p242 = pneg %p83
        $region46: #{tpu_custom_call.1} parent=35 // pred_check_branch
          %244 = sbr.rel (%p242) target = $region48
        $region47: #{tpu_custom_call.1} parent=35 // pred_region
          %245 = dma.done %s238, 256
        $region48: #{tpu_custom_call.1} parent=35 // pred_fallthru
          _
        %s246 = sand.u32 %s20, 1
        %s247 = scalar_lea.sflag [#allocation3], %s246
        %s248 = sand.u32 %s96, 1
        %s249 = smul.addr %s248, 16
        %s250 = scalar_lea.vmem [#allocation8], %s249
        // Predicated region
        $region49: #{tpu_custom_call.1} parent=35 // pred_check
          %p251 = pneg %p109
        $region50: #{tpu_custom_call.1} parent=35 // pred_check_branch
          %253 = sbr.rel (%p251) target = $region52
        $region51: #{tpu_custom_call.1} parent=35 // pred_region
          %254 = dma.done %s247, 256
        $region52: #{tpu_custom_call.1} parent=35 // pred_fallthru
          _
        %p255 = pneg %p36
        %p256 = pneg %p33
        %p257 = pneg %p57
        %p258 = pneg %p54
        %s259 = sand.u32 %s20, 1
        %s260 = scalar_lea.sflag [#allocation3], %s259
        %s261 = sand.u32 %s70, 1
        %s262 = smul.addr %s261, 16
        %s263 = scalar_lea.vmem [#allocation7], %s262
        %p264 = pneg %p83
        %p265 = pneg %p80
        %s266 = sand.u32 %s20, 1
        %s267 = scalar_lea.sflag [#allocation3], %s266
        %s268 = sand.u32 %s96, 1
        %s269 = smul.addr %s268, 16
        %s270 = scalar_lea.vmem [#allocation8], %s269
        %p271 = pneg %p109
        %p272 = pneg %p106
        %p273 = pneg %p135
        %p274 = pneg %p132
        %s275 = sand.u32 %s122, 1
        %s276 = scalar_lea.sflag [#allocation4], %s275
        %s277 = sand.u32 %s122, 1
        %s278 = scalar_lea.vmem [#allocation9], %s277
        %v279 = vld [vmem:[%s241] sm:$0xff]
        %v280 = vld [vmem:[%s241 + $0x8] sm:$0xff]
        %v281 = vld [vmem:[%s250] sm:$0xff]
        %v282 = vld [vmem:[%s250 + $0x8] sm:$0xff]
        %v283 = vld [vmem:[#allocation2] sm:$0xff]
        %v284 = vld [vmem:[#allocation2 + $0x8] sm:$0xff]
        %v285 = vld [vmem:[#allocation5] sm:$0xff]
        %v286 = vld [vmem:[#allocation5 + $0x8] sm:$0xff]
        %v287 = vld [vmem:[#allocation5 + $0x10] sm:$0xff]
        %v288 = vld [vmem:[#allocation5 + $0x18] sm:$0xff]
        %v289 = vld [vmem:[#allocation5 + $0x20] sm:$0xff]
        %v290 = vld [vmem:[#allocation5 + $0x28] sm:$0xff]
        %v291 = vld [vmem:[#allocation5 + $0x30] sm:$0xff]
        %v292 = vld [vmem:[#allocation5 + $0x38] sm:$0xff]
        %vm293 = vcmask 130048
        %v295 = vsel %vm293, %v283, 0
        %v298 = vsel %vm293, %v284, 0
        %300 = vmatprep.subr.mxu0 0.0
        %301 = vmatpush1.msra.mxu0 %v279
        %302 = vmatprep.subr.mxu0 0.0
        %303 = vmatpush1.msra.mxu0 %v280
        %304 = vmatprep.subr.mxu0 0.0
        %305 = vmatpush1.msra.mxu0 0.0
        %306 = vmatprep.subr.mxu0 0.0
        %307 = vmatpush1.msra.mxu0 0.0
        %308 = vmatprep.subr.mxu0 0.0
        %309 = vmatpush1.msra.mxu0 0.0
        %310 = vmatprep.subr.mxu0 0.0
        %311 = vmatpush1.msra.mxu0 0.0
        %312 = vmatprep.subr.mxu0 0.0
        %313 = vmatpush1.msra.mxu0 0.0
        %314 = vmatprep.subr.mxu0 0.0
        %315 = vmatpush1.msra.mxu0 0.0
        %316 = vmatprep.subr.mxu0 0.0
        %317 = vmatpush1.msra.mxu0 0.0
        %318 = vmatprep.subr.mxu0 0.0
        %319 = vmatpush1.msra.mxu0 0.0
        %320 = vmatprep.subr.mxu0 0.0
        %321 = vmatpush1.msra.mxu0 0.0
        %322 = vmatprep.subr.mxu0 0.0
        %323 = vmatpush1.msra.mxu0 0.0
        %324 = vmatprep.subr.mxu0 0.0
        %325 = vmatpush1.msra.mxu0 0.0
        %326 = vmatprep.subr.mxu0 0.0
        %327 = vmatpush1.msra.mxu0 0.0
        %328 = vmatprep.subr.mxu0 0.0
        %329 = vmatpush1.msra.mxu0 0.0
        %330 = vmatprep.subr.mxu0 0.0
        %331 = vmatpush1.msra.mxu0 0.0
        %332 = vmatprep.subr.mxu0 0.0
        %333 = vmatpush1.msra.mxu0 0.0
        %334 = vmatprep.subr.mxu0 0.0
        %335 = vmatpush1.msra.mxu0 0.0
        %336 = vmatprep.subr.mxu0 0.0
        %337 = vmatpush1.msra.mxu0 0.0
        %338 = vmatprep.subr.mxu0 0.0
        %339 = vmatpush1.msra.mxu0 0.0
        %340 = vmatprep.subr.mxu0 0.0
        %341 = vmatpush1.msra.mxu0 0.0
        %342 = vmatprep.subr.mxu0 0.0
        %343 = vmatpush1.msra.mxu0 0.0
        %344 = vmatprep.subr.mxu0 0.0
        %345 = vmatpush1.msra.mxu0 0.0
        %346 = vmatprep.subr.mxu0 0.0
        %347 = vmatpush1.msra.mxu0 0.0
        %348 = vmatprep.subr.mxu0 0.0
        %349 = vmatpush1.msra.mxu0 0.0
        %350 = vmatprep.subr.mxu0 0.0
        %351 = vmatpush1.msra.mxu0 0.0
        %352 = vmatprep.subr.mxu0 0.0
        %353 = vmatpush1.msra.mxu0 0.0
        %354 = vmatprep.subr.mxu0 0.0
        %355 = vmatpush1.msra.mxu0 0.0
        %356 = vmatprep.subr.mxu0 0.0
        %357 = vmatpush1.msra.mxu0 0.0
        %358 = vmatprep.subr.mxu0 0.0
        %359 = vmatpush1.msra.mxu0 0.0
        %360 = vmatprep.subr.mxu0 0.0
        %361 = vmatpush1.msra.mxu0 0.0
        %362 = vmatprep.subr.mxu0 0.0
        %363 = vmatpush1.msra.mxu0 0.0
        %364 = vmatprep.mubr.f32.mxu0 0.0
        %365 = vmatmul.mubr.f32.gmra.mrb[0].mxu0 %v295
        %v366 = vpop.f32.mrb[0].mxu0
        %v367 = vadd.f32 0.0, %v366
        %v368 = vpop.f32.mrb[0].mxu0
        %369 = vmatprep.mubr.f32.mxu0 0.0
        %370 = vmatmul.mubr.f32.gmra.mrb[0].mxu0 %v298
        %v371 = vpop.f32.mrb[0].mxu0
        %v372 = vadd.f32 0.0, %v371
        %v373 = vpop.f32.mrb[0].mxu0
        %374 = vdwg.mxu0
        %vm375 = vcmask 523264
        %v377 = vsel %vm375, %v367, 0
        %v380 = vsel %vm375, %v372, 0
        %382 = vmatprep.subr.mxu0 0.0
        %383 = vmatpush1.msra.mxu0 %v285
        %384 = vmatprep.subr.mxu0 0.0
        %385 = vmatpush1.msra.mxu0 %v286
        %386 = vmatprep.subr.mxu0 0.0
        %387 = vmatpush1.msra.mxu0 %v287
        %388 = vmatprep.subr.mxu0 0.0
        %389 = vmatpush1.msra.mxu0 %v288
        %390 = vmatprep.subr.mxu0 0.0
        %391 = vmatpush1.msra.mxu0 %v289
        %392 = vmatprep.subr.mxu0 0.0
        %393 = vmatpush1.msra.mxu0 %v290
        %394 = vmatprep.subr.mxu0 0.0
        %395 = vmatpush1.msra.mxu0 %v291
        %396 = vmatprep.subr.mxu0 0.0
        %397 = vmatpush1.msra.mxu0 %v292
        %398 = vmatprep.subr.mxu0 0.0
        %399 = vmatpush1.msra.mxu0 0.0
        %400 = vmatprep.subr.mxu0 0.0
        %401 = vmatpush1.msra.mxu0 0.0
        %402 = vmatprep.subr.mxu0 0.0
        %403 = vmatpush1.msra.mxu0 0.0
        %404 = vmatprep.subr.mxu0 0.0
        %405 = vmatpush1.msra.mxu0 0.0
        %406 = vmatprep.subr.mxu0 0.0
        %407 = vmatpush1.msra.mxu0 0.0
        %408 = vmatprep.subr.mxu0 0.0
        %409 = vmatpush1.msra.mxu0 0.0
        %410 = vmatprep.subr.mxu0 0.0
        %411 = vmatpush1.msra.mxu0 0.0
        %412 = vmatprep.subr.mxu0 0.0
        %413 = vmatpush1.msra.mxu0 0.0
        %414 = vmatprep.subr.mxu0 0.0
        %415 = vmatpush1.msra.mxu0 0.0
        %416 = vmatprep.subr.mxu0 0.0
        %417 = vmatpush1.msra.mxu0 0.0
        %418 = vmatprep.subr.mxu0 0.0
        %419 = vmatpush1.msra.mxu0 0.0
        %420 = vmatprep.subr.mxu0 0.0
        %421 = vmatpush1.msra.mxu0 0.0
        %422 = vmatprep.subr.mxu0 0.0
        %423 = vmatpush1.msra.mxu0 0.0
        %424 = vmatprep.subr.mxu0 0.0
        %425 = vmatpush1.msra.mxu0 0.0
        %426 = vmatprep.subr.mxu0 0.0
        %427 = vmatpush1.msra.mxu0 0.0
        %428 = vmatprep.subr.mxu0 0.0
        %429 = vmatpush1.msra.mxu0 0.0
        %430 = vmatprep.subr.mxu0 0.0
        %431 = vmatpush1.msra.mxu0 0.0
        %432 = vmatprep.subr.mxu0 0.0
        %433 = vmatpush1.msra.mxu0 0.0
        %434 = vmatprep.subr.mxu0 0.0
        %435 = vmatpush1.msra.mxu0 0.0
        %436 = vmatprep.subr.mxu0 0.0
        %437 = vmatpush1.msra.mxu0 0.0
        %438 = vmatprep.subr.mxu0 0.0
        %439 = vmatpush1.msra.mxu0 0.0
        %440 = vmatprep.subr.mxu0 0.0
        %441 = vmatpush1.msra.mxu0 0.0
        %442 = vmatprep.subr.mxu0 0.0
        %443 = vmatpush1.msra.mxu0 0.0
        %444 = vmatprep.subr.mxu0 0.0
        %445 = vmatpush1.msra.mxu0 0.0
        %446 = vmatprep.mubr.f32.mxu0 0.0
        %447 = vmatmul.mubr.f32.gmra.mrb[0].mxu0 %v377
        %v448 = vpop.f32.mrb[0].mxu0
        %v449 = vadd.f32 0.0, %v448
        %v450 = vpop.f32.mrb[0].mxu0
        %451 = vmatprep.mubr.f32.mxu0 0.0
        %452 = vmatmul.mubr.f32.gmra.mrb[0].mxu0 %v380
        %v453 = vpop.f32.mrb[0].mxu0
        %v454 = vadd.f32 0.0, %v453
        %v455 = vpop.f32.mrb[0].mxu0
        %456 = vdwg.mxu0
        %457 = vmatprep.subr.mxu0 0.0
        %458 = vmatpush1.msra.mxu0 %v281
        %459 = vmatprep.subr.mxu0 0.0
        %460 = vmatpush1.msra.mxu0 %v282
        %461 = vmatprep.subr.mxu0 0.0
        %462 = vmatpush1.msra.mxu0 0.0
        %463 = vmatprep.subr.mxu0 0.0
        %464 = vmatpush1.msra.mxu0 0.0
        %465 = vmatprep.subr.mxu0 0.0
        %466 = vmatpush1.msra.mxu0 0.0
        %467 = vmatprep.subr.mxu0 0.0
        %468 = vmatpush1.msra.mxu0 0.0
        %469 = vmatprep.subr.mxu0 0.0
        %470 = vmatpush1.msra.mxu0 0.0
        %471 = vmatprep.subr.mxu0 0.0
        %472 = vmatpush1.msra.mxu0 0.0
        %473 = vmatprep.subr.mxu0 0.0
        %474 = vmatpush1.msra.mxu0 0.0
        %475 = vmatprep.subr.mxu0 0.0
        %476 = vmatpush1.msra.mxu0 0.0
        %477 = vmatprep.subr.mxu0 0.0
        %478 = vmatpush1.msra.mxu0 0.0
        %479 = vmatprep.subr.mxu0 0.0
        %480 = vmatpush1.msra.mxu0 0.0
        %481 = vmatprep.subr.mxu0 0.0
        %482 = vmatpush1.msra.mxu0 0.0
        %483 = vmatprep.subr.mxu0 0.0
        %484 = vmatpush1.msra.mxu0 0.0
        %485 = vmatprep.subr.mxu0 0.0
        %486 = vmatpush1.msra.mxu0 0.0
        %487 = vmatprep.subr.mxu0 0.0
        %488 = vmatpush1.msra.mxu0 0.0
        %489 = vmatprep.subr.mxu0 0.0
        %490 = vmatpush1.msra.mxu0 0.0
        %491 = vmatprep.subr.mxu0 0.0
        %492 = vmatpush1.msra.mxu0 0.0
        %493 = vmatprep.subr.mxu0 0.0
        %494 = vmatpush1.msra.mxu0 0.0
        %495 = vmatprep.subr.mxu0 0.0
        %496 = vmatpush1.msra.mxu0 0.0
        %497 = vmatprep.subr.mxu0 0.0
        %498 = vmatpush1.msra.mxu0 0.0
        %499 = vmatprep.subr.mxu0 0.0
        %500 = vmatpush1.msra.mxu0 0.0
        %501 = vmatprep.subr.mxu0 0.0
        %502 = vmatpush1.msra.mxu0 0.0
        %503 = vmatprep.subr.mxu0 0.0
        %504 = vmatpush1.msra.mxu0 0.0
        %505 = vmatprep.subr.mxu0 0.0
        %506 = vmatpush1.msra.mxu0 0.0
        %507 = vmatprep.subr.mxu0 0.0
        %508 = vmatpush1.msra.mxu0 0.0
        %509 = vmatprep.subr.mxu0 0.0
        %510 = vmatpush1.msra.mxu0 0.0
        %511 = vmatprep.subr.mxu0 0.0
        %512 = vmatpush1.msra.mxu0 0.0
        %513 = vmatprep.subr.mxu0 0.0
        %514 = vmatpush1.msra.mxu0 0.0
        %515 = vmatprep.subr.mxu0 0.0
        %516 = vmatpush1.msra.mxu0 0.0
        %517 = vmatprep.subr.mxu0 0.0
        %518 = vmatpush1.msra.mxu0 0.0
        %519 = vmatprep.subr.mxu0 0.0
        %520 = vmatpush1.msra.mxu0 0.0
        %521 = vmatprep.mubr.f32.mxu0 0.0
        %522 = vmatmul.mubr.f32.gmra.mrb[0].mxu0 %v295
        %v523 = vpop.f32.mrb[0].mxu0
        %v524 = vadd.f32 0.0, %v523
        %v525 = vpop.f32.mrb[0].mxu0
        %526 = vmatprep.mubr.f32.mxu0 0.0
        %527 = vmatmul.mubr.f32.gmra.mrb[0].mxu0 %v298
        %v528 = vpop.f32.mrb[0].mxu0
        %v529 = vadd.f32 0.0, %v528
        %v530 = vpop.f32.mrb[0].mxu0
        %531 = vdwg.mxu0
        %v533 = vsel %vm375, %v524, 0
        %v536 = vsel %vm375, %v529, 0
        %538 = vmatprep.subr.mxu0 0.0
        %539 = vmatpush1.msra.mxu0 %v285
        %540 = vmatprep.subr.mxu0 0.0
        %541 = vmatpush1.msra.mxu0 %v286
        %542 = vmatprep.subr.mxu0 0.0
        %543 = vmatpush1.msra.mxu0 %v287
        %544 = vmatprep.subr.mxu0 0.0
        %545 = vmatpush1.msra.mxu0 %v288
        %546 = vmatprep.subr.mxu0 0.0
        %547 = vmatpush1.msra.mxu0 %v289
        %548 = vmatprep.subr.mxu0 0.0
        %549 = vmatpush1.msra.mxu0 %v290
        %550 = vmatprep.subr.mxu0 0.0
        %551 = vmatpush1.msra.mxu0 %v291
        %552 = vmatprep.subr.mxu0 0.0
        %553 = vmatpush1.msra.mxu0 %v292
        %554 = vmatprep.subr.mxu0 0.0
        %555 = vmatpush1.msra.mxu0 0.0
        %556 = vmatprep.subr.mxu0 0.0
        %557 = vmatpush1.msra.mxu0 0.0
        %558 = vmatprep.subr.mxu0 0.0
        %559 = vmatpush1.msra.mxu0 0.0
        %560 = vmatprep.subr.mxu0 0.0
        %561 = vmatpush1.msra.mxu0 0.0
        %562 = vmatprep.subr.mxu0 0.0
        %563 = vmatpush1.msra.mxu0 0.0
        %564 = vmatprep.subr.mxu0 0.0
        %565 = vmatpush1.msra.mxu0 0.0
        %566 = vmatprep.subr.mxu0 0.0
        %567 = vmatpush1.msra.mxu0 0.0
        %568 = vmatprep.subr.mxu0 0.0
        %569 = vmatpush1.msra.mxu0 0.0
        %570 = vmatprep.subr.mxu0 0.0
        %571 = vmatpush1.msra.mxu0 0.0
        %572 = vmatprep.subr.mxu0 0.0
        %573 = vmatpush1.msra.mxu0 0.0
        %574 = vmatprep.subr.mxu0 0.0
        %575 = vmatpush1.msra.mxu0 0.0
        %576 = vmatprep.subr.mxu0 0.0
        %577 = vmatpush1.msra.mxu0 0.0
        %578 = vmatprep.subr.mxu0 0.0
        %579 = vmatpush1.msra.mxu0 0.0
        %580 = vmatprep.subr.mxu0 0.0
        %581 = vmatpush1.msra.mxu0 0.0
        %582 = vmatprep.subr.mxu0 0.0
        %583 = vmatpush1.msra.mxu0 0.0
        %584 = vmatprep.subr.mxu0 0.0
        %585 = vmatpush1.msra.mxu0 0.0
        %586 = vmatprep.subr.mxu0 0.0
        %587 = vmatpush1.msra.mxu0 0.0
        %588 = vmatprep.subr.mxu0 0.0
        %589 = vmatpush1.msra.mxu0 0.0
        %590 = vmatprep.subr.mxu0 0.0
        %591 = vmatpush1.msra.mxu0 0.0
        %592 = vmatprep.subr.mxu0 0.0
        %593 = vmatpush1.msra.mxu0 0.0
        %594 = vmatprep.subr.mxu0 0.0
        %595 = vmatpush1.msra.mxu0 0.0
        %596 = vmatprep.subr.mxu0 0.0
        %597 = vmatpush1.msra.mxu0 0.0
        %598 = vmatprep.subr.mxu0 0.0
        %599 = vmatpush1.msra.mxu0 0.0
        %600 = vmatprep.subr.mxu0 0.0
        %601 = vmatpush1.msra.mxu0 0.0
        %602 = vmatprep.mubr.f32.mxu0 0.0
        %603 = vmatmul.mubr.f32.gmra.mrb[0].mxu0 %v533
        %v604 = vpop.f32.mrb[0].mxu0
        %v605 = vadd.f32 0.0, %v604
        %v606 = vpop.f32.mrb[0].mxu0
        %607 = vmatprep.mubr.f32.mxu0 0.0
        %608 = vmatmul.mubr.f32.gmra.mrb[0].mxu0 %v536
        %v609 = vpop.f32.mrb[0].mxu0
        %v610 = vadd.f32 0.0, %v609
        %v611 = vpop.f32.mrb[0].mxu0
        %612 = vdwg.mxu0
        %v613 = vmul.f32 %v279, %v279
        %v614 = vmul.f32 %v280, %v280
        %615 = vmatprep.subr.mxu0 0.0
        %616 = vmatpush1.msra.mxu0 %v613
        %617 = vmatprep.subr.mxu0 0.0
        %618 = vmatpush1.msra.mxu0 %v614
        %619 = vmatprep.subr.mxu0 0.0
        %620 = vmatpush1.msra.mxu0 0.0
        %621 = vmatprep.subr.mxu0 0.0
        %622 = vmatpush1.msra.mxu0 0.0
        %623 = vmatprep.subr.mxu0 0.0
        %624 = vmatpush1.msra.mxu0 0.0
        %625 = vmatprep.subr.mxu0 0.0
        %626 = vmatpush1.msra.mxu0 0.0
        %627 = vmatprep.subr.mxu0 0.0
        %628 = vmatpush1.msra.mxu0 0.0
        %629 = vmatprep.subr.mxu0 0.0
        %630 = vmatpush1.msra.mxu0 0.0
        %631 = vmatprep.subr.mxu0 0.0
        %632 = vmatpush1.msra.mxu0 0.0
        %633 = vmatprep.subr.mxu0 0.0
        %634 = vmatpush1.msra.mxu0 0.0
        %635 = vmatprep.subr.mxu0 0.0
        %636 = vmatpush1.msra.mxu0 0.0
        %637 = vmatprep.subr.mxu0 0.0
        %638 = vmatpush1.msra.mxu0 0.0
        %639 = vmatprep.subr.mxu0 0.0
        %640 = vmatpush1.msra.mxu0 0.0
        %641 = vmatprep.subr.mxu0 0.0
        %642 = vmatpush1.msra.mxu0 0.0
        %643 = vmatprep.subr.mxu0 0.0
        %644 = vmatpush1.msra.mxu0 0.0
        %645 = vmatprep.subr.mxu0 0.0
        %646 = vmatpush1.msra.mxu0 0.0
        %647 = vmatprep.subr.mxu0 0.0
        %648 = vmatpush1.msra.mxu0 0.0
        %649 = vmatprep.subr.mxu0 0.0
        %650 = vmatpush1.msra.mxu0 0.0
        %651 = vmatprep.subr.mxu0 0.0
        %652 = vmatpush1.msra.mxu0 0.0
        %653 = vmatprep.subr.mxu0 0.0
        %654 = vmatpush1.msra.mxu0 0.0
        %655 = vmatprep.subr.mxu0 0.0
        %656 = vmatpush1.msra.mxu0 0.0
        %657 = vmatprep.subr.mxu0 0.0
        %658 = vmatpush1.msra.mxu0 0.0
        %659 = vmatprep.subr.mxu0 0.0
        %660 = vmatpush1.msra.mxu0 0.0
        %661 = vmatprep.subr.mxu0 0.0
        %662 = vmatpush1.msra.mxu0 0.0
        %663 = vmatprep.subr.mxu0 0.0
        %664 = vmatpush1.msra.mxu0 0.0
        %665 = vmatprep.subr.mxu0 0.0
        %666 = vmatpush1.msra.mxu0 0.0
        %667 = vmatprep.subr.mxu0 0.0
        %668 = vmatpush1.msra.mxu0 0.0
        %669 = vmatprep.subr.mxu0 0.0
        %670 = vmatpush1.msra.mxu0 0.0
        %671 = vmatprep.subr.mxu0 0.0
        %672 = vmatpush1.msra.mxu0 0.0
        %673 = vmatprep.subr.mxu0 0.0
        %674 = vmatpush1.msra.mxu0 0.0
        %675 = vmatprep.subr.mxu0 0.0
        %676 = vmatpush1.msra.mxu0 0.0
        %677 = vmatprep.subr.mxu0 0.0
        %678 = vmatpush1.msra.mxu0 0.0
        %679 = vmatprep.mubr.f32.mxu0 0.0
        %680 = vmatmul.mubr.f32.gmra.mrb[0].mxu0 %v295
        %v681 = vpop.f32.mrb[0].mxu0
        %v682 = vadd.f32 0.0, %v681
        %v683 = vpop.f32.mrb[0].mxu0
        %684 = vmatprep.mubr.f32.mxu0 0.0
        %685 = vmatmul.mubr.f32.gmra.mrb[0].mxu0 %v298
        %v686 = vpop.f32.mrb[0].mxu0
        %v687 = vadd.f32 0.0, %v686
        %v688 = vpop.f32.mrb[0].mxu0
        %689 = vdwg.mxu0
        %v691 = vsel %vm375, %v682, 0
        %v694 = vsel %vm375, %v687, 0
        %696 = vmatprep.subr.mxu0 0.0
        %697 = vmatpush1.msra.mxu0 %v285
        %698 = vmatprep.subr.mxu0 0.0
        %699 = vmatpush1.msra.mxu0 %v286
        %700 = vmatprep.subr.mxu0 0.0
        %701 = vmatpush1.msra.mxu0 %v287
        %702 = vmatprep.subr.mxu0 0.0
        %703 = vmatpush1.msra.mxu0 %v288
        %704 = vmatprep.subr.mxu0 0.0
        %705 = vmatpush1.msra.mxu0 %v289
        %706 = vmatprep.subr.mxu0 0.0
        %707 = vmatpush1.msra.mxu0 %v290
        %708 = vmatprep.subr.mxu0 0.0
        %709 = vmatpush1.msra.mxu0 %v291
        %710 = vmatprep.subr.mxu0 0.0
        %711 = vmatpush1.msra.mxu0 %v292
        %712 = vmatprep.subr.mxu0 0.0
        %713 = vmatpush1.msra.mxu0 0.0
        %714 = vmatprep.subr.mxu0 0.0
        %715 = vmatpush1.msra.mxu0 0.0
        %716 = vmatprep.subr.mxu0 0.0
        %717 = vmatpush1.msra.mxu0 0.0
        %718 = vmatprep.subr.mxu0 0.0
        %719 = vmatpush1.msra.mxu0 0.0
        %720 = vmatprep.subr.mxu0 0.0
        %721 = vmatpush1.msra.mxu0 0.0
        %722 = vmatprep.subr.mxu0 0.0
        %723 = vmatpush1.msra.mxu0 0.0
        %724 = vmatprep.subr.mxu0 0.0
        %725 = vmatpush1.msra.mxu0 0.0
        %726 = vmatprep.subr.mxu0 0.0
        %727 = vmatpush1.msra.mxu0 0.0
        %728 = vmatprep.subr.mxu0 0.0
        %729 = vmatpush1.msra.mxu0 0.0
        %730 = vmatprep.subr.mxu0 0.0
        %731 = vmatpush1.msra.mxu0 0.0
        %732 = vmatprep.subr.mxu0 0.0
        %733 = vmatpush1.msra.mxu0 0.0
        %734 = vmatprep.subr.mxu0 0.0
        %735 = vmatpush1.msra.mxu0 0.0
        %736 = vmatprep.subr.mxu0 0.0
        %737 = vmatpush1.msra.mxu0 0.0
        %738 = vmatprep.subr.mxu0 0.0
        %739 = vmatpush1.msra.mxu0 0.0
        %740 = vmatprep.subr.mxu0 0.0
        %741 = vmatpush1.msra.mxu0 0.0
        %742 = vmatprep.subr.mxu0 0.0
        %743 = vmatpush1.msra.mxu0 0.0
        %744 = vmatprep.subr.mxu0 0.0
        %745 = vmatpush1.msra.mxu0 0.0
        %746 = vmatprep.subr.mxu0 0.0
        %747 = vmatpush1.msra.mxu0 0.0
        %748 = vmatprep.subr.mxu0 0.0
        %749 = vmatpush1.msra.mxu0 0.0
        %750 = vmatprep.subr.mxu0 0.0
        %751 = vmatpush1.msra.mxu0 0.0
        %752 = vmatprep.subr.mxu0 0.0
        %753 = vmatpush1.msra.mxu0 0.0
        %754 = vmatprep.subr.mxu0 0.0
        %755 = vmatpush1.msra.mxu0 0.0
        %756 = vmatprep.subr.mxu0 0.0
        %757 = vmatpush1.msra.mxu0 0.0
        %758 = vmatprep.subr.mxu0 0.0
        %759 = vmatpush1.msra.mxu0 0.0
        %760 = vmatprep.mubr.f32.mxu0 0.0
        %761 = vmatmul.mubr.f32.gmra.mrb[0].mxu0 %v691
        %v762 = vpop.f32.mrb[0].mxu0
        %v763 = vadd.f32 0.0, %v762
        %v764 = vpop.f32.mrb[0].mxu0
        %765 = vmatprep.mubr.f32.mxu0 0.0
        %766 = vmatmul.mubr.f32.gmra.mrb[0].mxu0 %v694
        %v767 = vpop.f32.mrb[0].mxu0
        %v768 = vadd.f32 0.0, %v767
        %v769 = vpop.f32.mrb[0].mxu0
        %770 = vdwg.mxu0
        %v771 = vmul.f32 %v281, %v281
        %v772 = vmul.f32 %v282, %v282
        %773 = vmatprep.subr.mxu0 0.0
        %774 = vmatpush1.msra.mxu0 %v771
        %775 = vmatprep.subr.mxu0 0.0
        %776 = vmatpush1.msra.mxu0 %v772
        %777 = vmatprep.subr.mxu0 0.0
        %778 = vmatpush1.msra.mxu0 0.0
        %779 = vmatprep.subr.mxu0 0.0
        %780 = vmatpush1.msra.mxu0 0.0
        %781 = vmatprep.subr.mxu0 0.0
        %782 = vmatpush1.msra.mxu0 0.0
        %783 = vmatprep.subr.mxu0 0.0
        %784 = vmatpush1.msra.mxu0 0.0
        %785 = vmatprep.subr.mxu0 0.0
        %786 = vmatpush1.msra.mxu0 0.0
        %787 = vmatprep.subr.mxu0 0.0
        %788 = vmatpush1.msra.mxu0 0.0
        %789 = vmatprep.subr.mxu0 0.0
        %790 = vmatpush1.msra.mxu0 0.0
        %791 = vmatprep.subr.mxu0 0.0
        %792 = vmatpush1.msra.mxu0 0.0
        %793 = vmatprep.subr.mxu0 0.0
        %794 = vmatpush1.msra.mxu0 0.0
        %795 = vmatprep.subr.mxu0 0.0
        %796 = vmatpush1.msra.mxu0 0.0
        %797 = vmatprep.subr.mxu0 0.0
        %798 = vmatpush1.msra.mxu0 0.0
        %799 = vmatprep.subr.mxu0 0.0
        %800 = vmatpush1.msra.mxu0 0.0
        %801 = vmatprep.subr.mxu0 0.0
        %802 = vmatpush1.msra.mxu0 0.0
        %803 = vmatprep.subr.mxu0 0.0
        %804 = vmatpush1.msra.mxu0 0.0
        %805 = vmatprep.subr.mxu0 0.0
        %806 = vmatpush1.msra.mxu0 0.0
        %807 = vmatprep.subr.mxu0 0.0
        %808 = vmatpush1.msra.mxu0 0.0
        %809 = vmatprep.subr.mxu0 0.0
        %810 = vmatpush1.msra.mxu0 0.0
        %811 = vmatprep.subr.mxu0 0.0
        %812 = vmatpush1.msra.mxu0 0.0
        %813 = vmatprep.subr.mxu0 0.0
        %814 = vmatpush1.msra.mxu0 0.0
        %815 = vmatprep.subr.mxu0 0.0
        %816 = vmatpush1.msra.mxu0 0.0
        %817 = vmatprep.subr.mxu0 0.0
        %818 = vmatpush1.msra.mxu0 0.0
        %819 = vmatprep.subr.mxu0 0.0
        %820 = vmatpush1.msra.mxu0 0.0
        %821 = vmatprep.subr.mxu0 0.0
        %822 = vmatpush1.msra.mxu0 0.0
        %823 = vmatprep.subr.mxu0 0.0
        %824 = vmatpush1.msra.mxu0 0.0
        %825 = vmatprep.subr.mxu0 0.0
        %826 = vmatpush1.msra.mxu0 0.0
        %827 = vmatprep.subr.mxu0 0.0
        %828 = vmatpush1.msra.mxu0 0.0
        %829 = vmatprep.subr.mxu0 0.0
        %830 = vmatpush1.msra.mxu0 0.0
        %831 = vmatprep.subr.mxu0 0.0
        %832 = vmatpush1.msra.mxu0 0.0
        %833 = vmatprep.subr.mxu0 0.0
        %834 = vmatpush1.msra.mxu0 0.0
        %835 = vmatprep.subr.mxu0 0.0
        %836 = vmatpush1.msra.mxu0 0.0
        %837 = vmatprep.mubr.f32.mxu0 0.0
        %838 = vmatmul.mubr.f32.gmra.mrb[0].mxu0 %v295
        %v839 = vpop.f32.mrb[0].mxu0
        %v840 = vadd.f32 0.0, %v839
        %v841 = vpop.f32.mrb[0].mxu0
        %842 = vmatprep.mubr.f32.mxu0 0.0
        %843 = vmatmul.mubr.f32.gmra.mrb[0].mxu0 %v298
        %v844 = vpop.f32.mrb[0].mxu0
        %v845 = vadd.f32 0.0, %v844
        %v846 = vpop.f32.mrb[0].mxu0
        %847 = vdwg.mxu0
        %v849 = vsel %vm375, %v840, 0
        %v852 = vsel %vm375, %v845, 0
        %854 = vmatprep.subr.mxu0 0.0
        %855 = vmatpush1.msra.mxu0 %v285
        %856 = vmatprep.subr.mxu0 0.0
        %857 = vmatpush1.msra.mxu0 %v286
        %858 = vmatprep.subr.mxu0 0.0
        %859 = vmatpush1.msra.mxu0 %v287
        %860 = vmatprep.subr.mxu0 0.0
        %861 = vmatpush1.msra.mxu0 %v288
        %862 = vmatprep.subr.mxu0 0.0
        %863 = vmatpush1.msra.mxu0 %v289
        %864 = vmatprep.subr.mxu0 0.0
        %865 = vmatpush1.msra.mxu0 %v290
        %866 = vmatprep.subr.mxu0 0.0
        %867 = vmatpush1.msra.mxu0 %v291
        %868 = vmatprep.subr.mxu0 0.0
        %869 = vmatpush1.msra.mxu0 %v292
        %870 = vmatprep.subr.mxu0 0.0
        %871 = vmatpush1.msra.mxu0 0.0
        %872 = vmatprep.subr.mxu0 0.0
        %873 = vmatpush1.msra.mxu0 0.0
        %874 = vmatprep.subr.mxu0 0.0
        %875 = vmatpush1.msra.mxu0 0.0
        %876 = vmatprep.subr.mxu0 0.0
        %877 = vmatpush1.msra.mxu0 0.0
        %878 = vmatprep.subr.mxu0 0.0
        %879 = vmatpush1.msra.mxu0 0.0
        %880 = vmatprep.subr.mxu0 0.0
        %881 = vmatpush1.msra.mxu0 0.0
        %882 = vmatprep.subr.mxu0 0.0
        %883 = vmatpush1.msra.mxu0 0.0
        %884 = vmatprep.subr.mxu0 0.0
        %885 = vmatpush1.msra.mxu0 0.0
        %886 = vmatprep.subr.mxu0 0.0
        %887 = vmatpush1.msra.mxu0 0.0
        %888 = vmatprep.subr.mxu0 0.0
        %889 = vmatpush1.msra.mxu0 0.0
        %890 = vmatprep.subr.mxu0 0.0
        %891 = vmatpush1.msra.mxu0 0.0
        %892 = vmatprep.subr.mxu0 0.0
        %893 = vmatpush1.msra.mxu0 0.0
        %894 = vmatprep.subr.mxu0 0.0
        %895 = vmatpush1.msra.mxu0 0.0
        %896 = vmatprep.subr.mxu0 0.0
        %897 = vmatpush1.msra.mxu0 0.0
        %898 = vmatprep.subr.mxu0 0.0
        %899 = vmatpush1.msra.mxu0 0.0
        %900 = vmatprep.subr.mxu0 0.0
        %901 = vmatpush1.msra.mxu0 0.0
        %902 = vmatprep.subr.mxu0 0.0
        %903 = vmatpush1.msra.mxu0 0.0
        %904 = vmatprep.subr.mxu0 0.0
        %905 = vmatpush1.msra.mxu0 0.0
        %906 = vmatprep.subr.mxu0 0.0
        %907 = vmatpush1.msra.mxu0 0.0
        %908 = vmatprep.subr.mxu0 0.0
        %909 = vmatpush1.msra.mxu0 0.0
        %910 = vmatprep.subr.mxu0 0.0
        %911 = vmatpush1.msra.mxu0 0.0
        %912 = vmatprep.subr.mxu0 0.0
        %913 = vmatpush1.msra.mxu0 0.0
        %914 = vmatprep.subr.mxu0 0.0
        %915 = vmatpush1.msra.mxu0 0.0
        %916 = vmatprep.subr.mxu0 0.0
        %917 = vmatpush1.msra.mxu0 0.0
        %918 = vmatprep.mubr.f32.mxu0 0.0
        %919 = vmatmul.mubr.f32.gmra.mrb[0].mxu0 %v849
        %v920 = vpop.f32.mrb[0].mxu0
        %v921 = vadd.f32 0.0, %v920
        %v922 = vpop.f32.mrb[0].mxu0
        %923 = vmatprep.mubr.f32.mxu0 0.0
        %924 = vmatmul.mubr.f32.gmra.mrb[0].mxu0 %v852
        %v925 = vpop.f32.mrb[0].mxu0
        %v926 = vadd.f32 0.0, %v925
        %v927 = vpop.f32.mrb[0].mxu0
        %928 = vdwg.mxu0
        %v929 = vmul.f32 %v279, %v281
        %v930 = vmul.f32 %v280, %v282
        %931 = vmatprep.subr.mxu0 0.0
        %932 = vmatpush1.msra.mxu0 %v929
        %933 = vmatprep.subr.mxu0 0.0
        %934 = vmatpush1.msra.mxu0 %v930
        %935 = vmatprep.subr.mxu0 0.0
        %936 = vmatpush1.msra.mxu0 0.0
        %937 = vmatprep.subr.mxu0 0.0
        %938 = vmatpush1.msra.mxu0 0.0
        %939 = vmatprep.subr.mxu0 0.0
        %940 = vmatpush1.msra.mxu0 0.0
        %941 = vmatprep.subr.mxu0 0.0
        %942 = vmatpush1.msra.mxu0 0.0
        %943 = vmatprep.subr.mxu0 0.0
        %944 = vmatpush1.msra.mxu0 0.0
        %945 = vmatprep.subr.mxu0 0.0
        %946 = vmatpush1.msra.mxu0 0.0
        %947 = vmatprep.subr.mxu0 0.0
        %948 = vmatpush1.msra.mxu0 0.0
        %949 = vmatprep.subr.mxu0 0.0
        %950 = vmatpush1.msra.mxu0 0.0
        %951 = vmatprep.subr.mxu0 0.0
        %952 = vmatpush1.msra.mxu0 0.0
        %953 = vmatprep.subr.mxu0 0.0
        %954 = vmatpush1.msra.mxu0 0.0
        %955 = vmatprep.subr.mxu0 0.0
        %956 = vmatpush1.msra.mxu0 0.0
        %957 = vmatprep.subr.mxu0 0.0
        %958 = vmatpush1.msra.mxu0 0.0
        %959 = vmatprep.subr.mxu0 0.0
        %960 = vmatpush1.msra.mxu0 0.0
        %961 = vmatprep.subr.mxu0 0.0
        %962 = vmatpush1.msra.mxu0 0.0
        %963 = vmatprep.subr.mxu0 0.0
        %964 = vmatpush1.msra.mxu0 0.0
        %965 = vmatprep.subr.mxu0 0.0
        %966 = vmatpush1.msra.mxu0 0.0
        %967 = vmatprep.subr.mxu0 0.0
        %968 = vmatpush1.msra.mxu0 0.0
        %969 = vmatprep.subr.mxu0 0.0
        %970 = vmatpush1.msra.mxu0 0.0
        %971 = vmatprep.subr.mxu0 0.0
        %972 = vmatpush1.msra.mxu0 0.0
        %973 = vmatprep.subr.mxu0 0.0
        %974 = vmatpush1.msra.mxu0 0.0
        %975 = vmatprep.subr.mxu0 0.0
        %976 = vmatpush1.msra.mxu0 0.0
        %977 = vmatprep.subr.mxu0 0.0
        %978 = vmatpush1.msra.mxu0 0.0
        %979 = vmatprep.subr.mxu0 0.0
        %980 = vmatpush1.msra.mxu0 0.0
        %981 = vmatprep.subr.mxu0 0.0
        %982 = vmatpush1.msra.mxu0 0.0
        %983 = vmatprep.subr.mxu0 0.0
        %984 = vmatpush1.msra.mxu0 0.0
        %985 = vmatprep.subr.mxu0 0.0
        %986 = vmatpush1.msra.mxu0 0.0
        %987 = vmatprep.subr.mxu0 0.0
        %988 = vmatpush1.msra.mxu0 0.0
        %989 = vmatprep.subr.mxu0 0.0
        %990 = vmatpush1.msra.mxu0 0.0
        %991 = vmatprep.subr.mxu0 0.0
        %992 = vmatpush1.msra.mxu0 0.0
        %993 = vmatprep.subr.mxu0 0.0
        %994 = vmatpush1.msra.mxu0 0.0
        %995 = vmatprep.mubr.f32.mxu0 0.0
        %996 = vmatmul.mubr.f32.gmra.mrb[0].mxu0 %v295
        %v997 = vpop.f32.mrb[0].mxu0
        %v998 = vadd.f32 0.0, %v997
        %v999 = vpop.f32.mrb[0].mxu0
        %1000 = vmatprep.mubr.f32.mxu0 0.0
        %1001 = vmatmul.mubr.f32.gmra.mrb[0].mxu0 %v298
        %v1002 = vpop.f32.mrb[0].mxu0
        %v1003 = vadd.f32 0.0, %v1002
        %v1004 = vpop.f32.mrb[0].mxu0
        %1005 = vdwg.mxu0
        %v1007 = vsel %vm375, %v998, 0
        %v1010 = vsel %vm375, %v1003, 0
        %1012 = vmatprep.subr.mxu0 0.0
        %1013 = vmatpush1.msra.mxu0 %v285
        %1014 = vmatprep.subr.mxu0 0.0
        %1015 = vmatpush1.msra.mxu0 %v286
        %1016 = vmatprep.subr.mxu0 0.0
        %1017 = vmatpush1.msra.mxu0 %v287
        %1018 = vmatprep.subr.mxu0 0.0
        %1019 = vmatpush1.msra.mxu0 %v288
        %1020 = vmatprep.subr.mxu0 0.0
        %1021 = vmatpush1.msra.mxu0 %v289
        %1022 = vmatprep.subr.mxu0 0.0
        %1023 = vmatpush1.msra.mxu0 %v290
        %1024 = vmatprep.subr.mxu0 0.0
        %1025 = vmatpush1.msra.mxu0 %v291
        %1026 = vmatprep.subr.mxu0 0.0
        %1027 = vmatpush1.msra.mxu0 %v292
        %1028 = vmatprep.subr.mxu0 0.0
        %1029 = vmatpush1.msra.mxu0 0.0
        %1030 = vmatprep.subr.mxu0 0.0
        %1031 = vmatpush1.msra.mxu0 0.0
        %1032 = vmatprep.subr.mxu0 0.0
        %1033 = vmatpush1.msra.mxu0 0.0
        %1034 = vmatprep.subr.mxu0 0.0
        %1035 = vmatpush1.msra.mxu0 0.0
        %1036 = vmatprep.subr.mxu0 0.0
        %1037 = vmatpush1.msra.mxu0 0.0
        %1038 = vmatprep.subr.mxu0 0.0
        %1039 = vmatpush1.msra.mxu0 0.0
        %1040 = vmatprep.subr.mxu0 0.0
        %1041 = vmatpush1.msra.mxu0 0.0
        %1042 = vmatprep.subr.mxu0 0.0
        %1043 = vmatpush1.msra.mxu0 0.0
        %1044 = vmatprep.subr.mxu0 0.0
        %1045 = vmatpush1.msra.mxu0 0.0
        %1046 = vmatprep.subr.mxu0 0.0
        %1047 = vmatpush1.msra.mxu0 0.0
        %1048 = vmatprep.subr.mxu0 0.0
        %1049 = vmatpush1.msra.mxu0 0.0
        %1050 = vmatprep.subr.mxu0 0.0
        %1051 = vmatpush1.msra.mxu0 0.0
        %1052 = vmatprep.subr.mxu0 0.0
        %1053 = vmatpush1.msra.mxu0 0.0
        %1054 = vmatprep.subr.mxu0 0.0
        %1055 = vmatpush1.msra.mxu0 0.0
        %1056 = vmatprep.subr.mxu0 0.0
        %1057 = vmatpush1.msra.mxu0 0.0
        %1058 = vmatprep.subr.mxu0 0.0
        %1059 = vmatpush1.msra.mxu0 0.0
        %1060 = vmatprep.subr.mxu0 0.0
        %1061 = vmatpush1.msra.mxu0 0.0
        %1062 = vmatprep.subr.mxu0 0.0
        %1063 = vmatpush1.msra.mxu0 0.0
        %1064 = vmatprep.subr.mxu0 0.0
        %1065 = vmatpush1.msra.mxu0 0.0
        %1066 = vmatprep.subr.mxu0 0.0
        %1067 = vmatpush1.msra.mxu0 0.0
        %1068 = vmatprep.subr.mxu0 0.0
        %1069 = vmatpush1.msra.mxu0 0.0
        %1070 = vmatprep.subr.mxu0 0.0
        %1071 = vmatpush1.msra.mxu0 0.0
        %1072 = vmatprep.subr.mxu0 0.0
        %1073 = vmatpush1.msra.mxu0 0.0
        %1074 = vmatprep.subr.mxu0 0.0
        %1075 = vmatpush1.msra.mxu0 0.0
        %1076 = vmatprep.mubr.f32.mxu0 0.0
        %1077 = vmatmul.mubr.f32.gmra.mrb[0].mxu0 %v1007
        %v1078 = vpop.f32.mrb[0].mxu0
        %v1079 = vadd.f32 0.0, %v1078
        %v1080 = vpop.f32.mrb[0].mxu0
        %1081 = vmatprep.mubr.f32.mxu0 0.0
        %1082 = vmatmul.mubr.f32.gmra.mrb[0].mxu0 %v1010
        %v1083 = vpop.f32.mrb[0].mxu0
        %v1084 = vadd.f32 0.0, %v1083
        %v1085 = vpop.f32.mrb[0].mxu0
        %1086 = vdwg.mxu0
        %v1087 = vmul.f32 %v449, %v449
        %v1088 = vmul.f32 %v454, %v454
        %v1089 = vmul.f32 %v605, %v605
        %v1090 = vmul.f32 %v610, %v610
        %v1091 = vmul.f32 %v449, %v605
        %v1092 = vmul.f32 %v454, %v610
        %v1093 = vsub.f32 %v763, %v1087
        %v1094 = vsub.f32 %v768, %v1088
        %v1095 = vsub.f32 %v921, %v1089
        %v1096 = vsub.f32 %v926, %v1090
        %v1097 = vsub.f32 %v1079, %v1091
        %v1098 = vsub.f32 %v1084, %v1092
        %v1099 = vmul.f32 %v1091, 2.0
        %v1100 = vmul.f32 %v1092, 2.0
        %v1101 = vadd.f32 %v1099, 0.0001
        %v1102 = vadd.f32 %v1100, 0.0001
        %v1103 = vmul.f32 %v1097, 2.0
        %v1104 = vmul.f32 %v1098, 2.0
        %v1105 = vadd.f32 %v1103, 0.0009
        %v1106 = vadd.f32 %v1104, 0.0009
        %v1107 = vmul.f32 %v1101, %v1105
        %v1108 = vmul.f32 %v1102, %v1106
        %v1109 = vadd.f32 %v1087, %v1089
        %v1110 = vadd.f32 %v1088, %v1090
        %v1111 = vadd.f32 %v1109, 0.0001
        %v1112 = vadd.f32 %v1110, 0.0001
        %v1113 = vadd.f32 %v1093, %v1095
        %v1114 = vadd.f32 %v1094, %v1096
        %v1115 = vadd.f32 %v1113, 0.0009
        %v1116 = vadd.f32 %v1114, 0.0009
        %v1117 = vmul.f32 %v1111, %v1115
        %v1118 = vmul.f32 %v1112, %v1116
        %v1119 = vrcp.pop %v1117
        %v1120 = vrcp.pop %v1118
        %v1121 = vmul.f32 %v1107, %v1119
        %v1122 = vmul.f32 %v1108, %v1120
        %v1123 = vsel %vm375, %v1121, 0.0
        %v1124 = vsel %vm375, %v1122, 0.0
        %v1125 = vadd.f32 %v1123, %v1124
        %v1126 = vrot.slane %v1125, 4
        %v1127 = vadd.f32 %v1125, %v1126
        %v1128 = vrot.slane %v1127, 2
        %v1129 = vadd.f32 %v1127, %v1128
        %v1130 = vrot.slane %v1129, 1
        %v1131 = vadd.f32 %v1129, %v1130
        %vm1132 = vcmask 516096
        %1133 = vst.msk [vmem:[%s278] sm:$0x1] %vm1132, %v1131
        %s1134 = sand.u32 %s122, 1
        %s1135 = scalar_lea.sflag [#allocation4], %s1134
        %s1136 = sand.u32 %s122, 1
        %s1137 = scalar_lea.vmem [#allocation9], %s1136
        // Predicated region
        $region53: #{tpu_custom_call.1} parent=35 // pred_check
          %p1138 = pneg %p132
        $region54: #{tpu_custom_call.1} parent=35 // pred_check_branch
          %1140 = sbr.rel (%p1138) target = $region56
        $region55: #{tpu_custom_call.1} parent=35 // pred_region
          %s1142 = ssub.s32 16, 16
          %1143 = vsyncadd %s1135, %s1142
          %s1144 = smul.addr %s20, 16
          %s1145 = scalar_lea.hbm %s4, %s1144
          %s1147 = sshll.u32 %s1137, 4
          %s1148 = int_to_ptr.vmem [resolvable:$true] %s1147
          %1150 = dma.vmem_to_hbm [thread:$0]  %s1148, 16, %s1145, %s1135
        $region56: #{tpu_custom_call.1} parent=35 // pred_fallthru
          _
      $region36: #{tpu_custom_call.1} parent=5 // pred_fallthru
        _
      %p1151 = scmp.le.s32.totalorder 2, %s15
      // Predicated region
      $region57: #{tpu_custom_call.1} parent=5 // pred_check
        %p1152 = pneg %p1151
      $region58: #{tpu_custom_call.1} parent=5 // pred_check_branch
        %1154 = sbr.rel (%p1152) target = $region60
      $region59: #{tpu_custom_call.1} parent=5 // pred_region
        %s1155 = ssub.s32 %s15, 2
        // Predicated region
        $region61: #{tpu_custom_call.1} parent=59 // pred_check
          %p1156 = pneg %p138
        $region62: #{tpu_custom_call.1} parent=59 // pred_check_branch
          %1158 = sbr.rel (%p1156) target = $region64
        $region63: #{tpu_custom_call.1} parent=59 // pred_region
          %s1159 = sand.u32 %s123, 1
          %s1160 = scalar_lea.sflag [#allocation4], %s1159
          %s1161 = sand.u32 %s123, 1
          %s1162 = scalar_lea.vmem [#allocation9], %s1161
          %1163 = dma.done %s1160, 16
        $region64: #{tpu_custom_call.1} parent=59 // pred_fallthru
          _
      $region60: #{tpu_custom_call.1} parent=5 // pred_fallthru
        _
    $region6: #{tpu_custom_call.1} parent=1 // loop_footer
      %s19 = sadd.s32 1, %s15
    $region7: #{tpu_custom_call.1} parent=1 // loop_footer_branch
      %14 = sbr.rel target = $region3
    $region8: #{tpu_custom_call.1} parent=1 // loop_exit
      _
    %1164 = vsyncpa [#allocation3], 1
    %s1165 = scalar_lea.sflag [#allocation3], 1
    %1166 = vsyncpa %s1165, 1
    %1167 = vsyncpa [#allocation6], 1
    %1168 = vsyncpa [#allocation4], 1
    %s1169 = scalar_lea.sflag [#allocation4], 1
    %1170 = vsyncpa %s1169, 1

</llo_original>
